<compile_context>
chip_gen: v7x
topology: tpu7x:2x2x1
jax: 0.10.0
libtpu: 0.0.40
codegen_flags: <defaults>
</compile_context>

<pallas_src>
import functools

import jax
import jax.numpy as jnp
from jax.experimental import pallas as pl
from jax.experimental.pallas import tpu as pltpu


LANE = 128          # minimum lane-dense feature padding
SUBLANE = 8         # batch tiles must be a multiple of the sublane width
MAX_TILE_ROWS = 512 # large-batch tile (512-row tiles ~85% of HBM roofline)
# Conservative budget for keeping the whole weight stack VMEM-resident: must fit
# v7x's 64 MiB physical VMEM alongside activation tiles and double-buffering.
WEIGHT_VMEM_BUDGET = 24 << 20


def _round_up(x, m):
    return ((x + m - 1) // m) * m


def _padded_width(layers):
    """Common padded feature width P for all layers.

    128-aligned for toy widths; 256-aligned once wider than one 128-lane tile
    (v6e/v7x MXU tiles are 256x256; v5e only pays a little extra padding).
    """
    w = max(layers)
    return _round_up(w, LANE) if w <= LANE else _round_up(w, 2 * LANE)


def _choose_tiling(batch):
    """Pick (tile_rows, padded_batch_rows)."""
    bp = _round_up(batch, SUBLANE)
    if bp >= 2 * LANE:
        # >= 2 grid steps so v7x's second TensorCore participates, while
        # growing tiles toward MAX_TILE_ROWS for denser DMAs.
        tb = min(MAX_TILE_ROWS, _round_up(pl.cdiv(bp, 2), SUBLANE))
    else:
        tb = bp                                  # tiny batch: one 8-padded tile
    bp = _round_up(bp, tb)
    return tb, bp


# ---------------- single-buffering probe (pl.Buffered(1)) ----------------

_SINGLE_BUFFER = None
_SINGLE_BUFFER_PROBED = False


def _single_buffer_mode():
    """Return pl.Buffered(1) if this jax build accepts single-buffered constant
    blocks, else None (fall back to default double-buffering)."""
    global _SINGLE_BUFFER, _SINGLE_BUFFER_PROBED
    if _SINGLE_BUFFER_PROBED:
        return _SINGLE_BUFFER
    _SINGLE_BUFFER_PROBED = True
    try:
        mode = pl.Buffered(1)

        def _copy(x_ref, o_ref):
            o_ref[...] = x_ref[...]

        probe = pl.pallas_call(
            _copy,
            out_shape=jax.ShapeDtypeStruct((SUBLANE, LANE), jnp.float32),
            grid=(1,),
            in_specs=[pl.BlockSpec((SUBLANE, LANE), lambda i: (0, 0),
                                   pipeline_mode=mode)],
            out_specs=pl.BlockSpec((SUBLANE, LANE), lambda i: (0, 0)),
        )
        jax.block_until_ready(probe(jnp.zeros((SUBLANE, LANE), jnp.float32)))
        _SINGLE_BUFFER = mode
    except Exception:
        _SINGLE_BUFFER = None
    return _SINGLE_BUFFER


# ---------------- Fused MLP kernel ----------------

def _mlp_fused_kernel(x_ref, w_ref, b_ref, o_ref):
    """Entire MLP in one kernel invocation.

    x_ref: [TB, P]       activation tile (batch rows x padded features)
    w_ref: [L, P, P]     all layer weights, zero-padded to a common width P
    b_ref: [L-1, 1, P]   biases for all layers except the last (no output bias)
    o_ref: [TB, P]       padded output tile (valid columns sliced in the wrapper)
    """
    n_layers = w_ref.shape[0]
    h = x_ref[...]
    # Static (fully unrolled) layer loop: one contiguous instruction stream.
    for l in range(n_layers - 1):
        y = jnp.dot(h, w_ref[l], preferred_element_type=jnp.float32)
        # bias is [1, P] -> broadcasts over rows; keep activations in the input
        # dtype so a bf16-operand path stays bf16 between layers.
        h = jnp.tanh(y + b_ref[l]).astype(x_ref.dtype)
    o_ref[...] = jnp.dot(
        h, w_ref[n_layers - 1], preferred_element_type=jnp.float32
    ).astype(o_ref.dtype)


# ---------------- Wrapper ----------------

def mlp_fused(x, w_stack, b_stack, layer_dims):
    """Fused MLP forward. layer_dims = (in, h1, ..., out), static."""
    batch, in_features = x.shape
    L, P, _ = w_stack.shape
    out_features = layer_dims[-1]

    tb, batch_p = _choose_tiling(batch)

    # Zero-pad activations to (batch_p, P). Padded feature columns see zero
    # weight rows/cols and zero bias, so tanh(0)=0 keeps them inert layer-to-layer.
    # TODO(synk): for repeated tiny-batch calls, accept pre-padded activations /
    # return the padded slab to keep the pad/slice HLOs out of the hot path.
    x_p = jnp.pad(x, ((0, batch_p - batch), (0, P - in_features)))
    x_p = x_p.astype(w_stack.dtype)

    # ---- VMEM budget for the "all weights resident" strategy ----
    buffered = _single_buffer_mode()
    spec_kwargs = {} if buffered is None else {"pipeline_mode": buffered}
    w_bufs = 1 if buffered is not None else 2
    itemsize = jnp.dtype(w_stack.dtype).itemsize
    weight_bytes = w_bufs * itemsize * (L * P * P + (L - 1) * P)
    if weight_bytes > WEIGHT_VMEM_BUDGET:
        # TODO(synk): stream per-layer weight tiles (grid axis over L or
        # pltpu.emit_pipeline) once the stack no longer fits v7x's 64 MiB VMEM.
        raise NotImplementedError(
            f"weight stack needs {weight_bytes / 2**20:.1f} MiB of VMEM; "
            "layer-streaming path not implemented")
    act_bytes = 2 * tb * P * (itemsize + 4)       # double-buffered x tile + f32 out tile
    needed = weight_bytes + act_bytes
    vmem_limit = None
    if needed > (16 << 20):                        # only override the default scoped limit
        vmem_limit = min(int(needed) + (8 << 20), 64 << 20)

    # Cost of the *real* (unpadded) work so XLA schedules around this call sanely.
    fan_pairs = list(zip(layer_dims[:-1], layer_dims[1:]))
    flops = 2 * batch * sum(a * b for a, b in fan_pairs)
    trans = batch * sum(layer_dims[1:-1])
    bytes_accessed = itemsize * (
        batch * (in_features + out_features)
        + sum(a * b for a, b in fan_pairs)
        + sum(layer_dims[1:-1]))
    cost = pl.CostEstimate(flops=flops, transcendentals=trans,
                           bytes_accessed=bytes_accessed)

    cp_kwargs = dict(dimension_semantics=("parallel",))  # shard batch tiles (v7x)
    if vmem_limit is not None:
        cp_kwargs["vmem_limit_bytes"] = vmem_limit

    out_p = pl.pallas_call(
        _mlp_fused_kernel,
        out_shape=jax.ShapeDtypeStruct((batch_p, P), jnp.float32),
        grid_spec=pltpu.PrefetchScalarGridSpec(
            num_scalar_prefetch=0,
            grid=(batch_p // tb,),
            in_specs=[
                pl.BlockSpec((tb, P), lambda i: (i, 0)),           # x: tiled over batch
                pl.BlockSpec((L, P, P), lambda i: (0, 0, 0),       # weights: VMEM-resident
                             **spec_kwargs),
                pl.BlockSpec((L - 1, 1, P), lambda i: (0, 0, 0),   # biases: VMEM-resident
                             **spec_kwargs),
            ],
            out_specs=pl.BlockSpec((tb, P), lambda i: (i, 0)),
        ),
        compiler_params=pltpu.CompilerParams(**cp_kwargs),
        cost_estimate=cost,
    )(x_p, w_stack, b_stack)

    return out_p[:batch, :out_features]


# ---------------- Net (parameter setup + packing) ----------------

def init_net_params(key, layers):
    """Deterministic init mirroring Net.__init__.

    layers = [in, h1, ..., h_{n-1}, out]
      input_layer:   Linear(layers[0] -> layers[1], bias=True)
      hidden_layers: Linear(layers[i] -> layers[i+1], bias=True), i = 1..len-3
      output_layer:  Linear(layers[-2] -> layers[-1], bias=False)
    Weights stored as [in, out] (transpose of PyTorch's [out, in]); bias as [1, out].
    """
    params = {"hidden": []}
    n_biased = len(layers) - 2
    keys = jax.random.split(key, n_biased * 2 + 1)

    def _wb(kw, kb, fan_in, fan_out):
        lim = 1.0 / jnp.sqrt(jnp.float32(fan_in))
        w = jax.random.uniform(kw, (fan_in, fan_out), jnp.float32, -lim, lim)
        b = jax.random.uniform(kb, (1, fan_out), jnp.float32, -lim, lim)
        return w, b

    ki = 0
    params["input"] = _wb(keys[ki], keys[ki + 1], layers[0], layers[1])
    ki += 2
    for i in range(1, len(layers) - 2):
        params["hidden"].append(_wb(keys[ki], keys[ki + 1], layers[i], layers[i + 1]))
        ki += 2
    lim = 1.0 / jnp.sqrt(jnp.float32(layers[-2]))
    params["output"] = jax.random.uniform(
        keys[ki], (layers[-2], layers[-1]), jnp.float32, -lim, lim
    )
    return params


def pack_params(params, layers, dtype=jnp.float32):
    """Zero-pad every layer to [P, P] / [1, P] and stack for the fused kernel.

    dtype=jnp.bfloat16 gives the bf16-operand / f32-accumulate path (loosen the
    numerical tolerance to ~1e-2 if used).
    """
    P = _padded_width(layers)
    w_list, b_list = [], []
    for (w, b) in [params["input"]] + list(params["hidden"]):
        fi, fo = w.shape
        w_list.append(jnp.pad(w, ((0, P - fi), (0, P - fo))))
        b_list.append(jnp.pad(b, ((0, 0), (0, P - fo))))
    w_out = params["output"]
    fi, fo = w_out.shape
    w_list.append(jnp.pad(w_out, ((0, P - fi), (0, P - fo))))
    w_stack = jnp.stack(w_list, axis=0).astype(dtype)   # [L, P, P]
    b_stack = jnp.stack(b_list, axis=0).astype(dtype)   # [L-1, 1, P]
    return w_stack, b_stack


def _reference_forward(x, params):
    wi, bi = params["input"]
    h = jnp.tanh(x @ wi + bi)
    for (w, b) in params["hidden"]:
        h = jnp.tanh(h @ w + b)
    return h @ params["output"]


# ---------------- Main ----------------

if __name__ == "__main__":
    layers = [16, 32, 32, 8]              # in, hidden, hidden, out
    batch = 8

    key = jax.random.PRNGKey(0)
    k_params, k_x, k_x2 = jax.random.split(key, 3)

    params = init_net_params(k_params, layers)
    w_stack, b_stack = pack_params(params, layers)     # f32 path (1e-5 tolerance)

    fwd = jax.jit(functools.partial(mlp_fused, layer_dims=tuple(layers)))

    # tiny-batch path (single 8-row tile, grid=1)
    x = jax.random.normal(k_x, (batch, layers[0]), jnp.float32)
    out = jax.block_until_ready(fwd(x, w_stack, b_stack))
    ref = _reference_forward(x, params)
    assert out.shape == (batch, layers[-1])
    assert jnp.allclose(out, ref, atol=1e-5, rtol=1e-5)

    # moderate-batch path (row padding + >=2 grid steps for v7x megacore)
    batch2 = 270
    x2 = jax.random.normal(k_x2, (batch2, layers[0]), jnp.float32)
    out2 = jax.block_until_ready(fwd(x2, w_stack, b_stack))
    ref2 = _reference_forward(x2, params)
    assert out2.shape == (batch2, layers[-1])
    assert jnp.allclose(out2, ref2, atol=1e-5, rtol=1e-5)

    print("KERNEL_OK")
</pallas_src>

<mosaic_0001>
module attributes {stable_mosaic.version = 11 : i64} {
  func.func @_mlp_fused_kernel(%arg0: i32, %arg1: memref<8x128xf32, #tpu.memory_space<vmem>>, %arg2: memref<3x128x128xf32, #tpu.memory_space<vmem>>, %arg3: memref<2x1x128xf32, #tpu.memory_space<vmem>>, %arg4: memref<8x128xf32, #tpu.memory_space<vmem>>) attributes {dimension_semantics = [#tpu.dimension_semantics<parallel>], iteration_bounds = array<i64: 1>, scalar_prefetch = 0 : i64, scratch_operands = 0 : i64, tpu.core_type = #tpu.core_type<tc>, window_params = [{transform_indices = @transform_0, window_bounds = array<i64: 8, 128>}, {pipeline_mode = #tpu.pipeline_mode<synchronous>, transform_indices = @transform_1, window_bounds = array<i64: 3, 128, 128>}, {pipeline_mode = #tpu.pipeline_mode<synchronous>, transform_indices = @transform_2, window_bounds = array<i64: 2, 1, 128>}, {transform_indices = @transform_3, window_bounds = array<i64: 8, 128>}]} {
    %c0 = arith.constant 0 : index
    %c0_0 = arith.constant 0 : index
    %0 = vector.load %arg1[%c0, %c0_0] : memref<8x128xf32, #tpu.memory_space<vmem>>, vector<8x128xf32>
    %c0_1 = arith.constant 0 : index
    %c0_2 = arith.constant 0 : index
    %c0_3 = arith.constant 0 : index
    %1 = vector.load %arg2[%c0_1, %c0_2, %c0_3] : memref<3x128x128xf32, #tpu.memory_space<vmem>>, vector<1x128x128xf32>
    %2 = vector.shape_cast %1 : vector<1x128x128xf32> to vector<128x128xf32>
    %cst = arith.constant dense<0.000000e+00> : vector<8x128xf32>
    %3 = tpu.matmul %0, %2, %cst {dimension_numbers = #tpu.dot_dimension_numbers<[1], [0], [0], [1], [0, 0, 1, 1], [], []>} : vector<8x128xf32>, vector<128x128xf32>, vector<8x128xf32> -> vector<8x128xf32>
    %c0_4 = arith.constant 0 : index
    %c0_5 = arith.constant 0 : index
    %c0_6 = arith.constant 0 : index
    %4 = vector.load %arg3[%c0_4, %c0_5, %c0_6] : memref<2x1x128xf32, #tpu.memory_space<vmem>>, vector<1x1x128xf32>
    %5 = vector.shape_cast %4 : vector<1x1x128xf32> to vector<1x128xf32>
    %6 = vector.broadcast %5 : vector<1x128xf32> to vector<8x128xf32>
    %7 = arith.addf %3, %6 : vector<8x128xf32>
    %8 = math.tanh %7 : vector<8x128xf32>
    %c1 = arith.constant 1 : index
    %c0_7 = arith.constant 0 : index
    %c0_8 = arith.constant 0 : index
    %9 = vector.load %arg2[%c1, %c0_7, %c0_8] : memref<3x128x128xf32, #tpu.memory_space<vmem>>, vector<1x128x128xf32>
    %10 = vector.shape_cast %9 : vector<1x128x128xf32> to vector<128x128xf32>
    %cst_9 = arith.constant dense<0.000000e+00> : vector<8x128xf32>
    %11 = tpu.matmul %8, %10, %cst_9 {dimension_numbers = #tpu.dot_dimension_numbers<[1], [0], [0], [1], [0, 0, 1, 1], [], []>} : vector<8x128xf32>, vector<128x128xf32>, vector<8x128xf32> -> vector<8x128xf32>
    %c1_10 = arith.constant 1 : index
    %c0_11 = arith.constant 0 : index
    %c0_12 = arith.constant 0 : index
    %12 = vector.load %arg3[%c1_10, %c0_11, %c0_12] : memref<2x1x128xf32, #tpu.memory_space<vmem>>, vector<1x1x128xf32>
    %13 = vector.shape_cast %12 : vector<1x1x128xf32> to vector<1x128xf32>
    %14 = vector.broadcast %13 : vector<1x128xf32> to vector<8x128xf32>
    %15 = arith.addf %11, %14 : vector<8x128xf32>
    %16 = math.tanh %15 : vector<8x128xf32>
    %c2 = arith.constant 2 : index
    %c0_13 = arith.constant 0 : index
    %c0_14 = arith.constant 0 : index
    %17 = vector.load %arg2[%c2, %c0_13, %c0_14] : memref<3x128x128xf32, #tpu.memory_space<vmem>>, vector<1x128x128xf32>
    %18 = vector.shape_cast %17 : vector<1x128x128xf32> to vector<128x128xf32>
    %cst_15 = arith.constant dense<0.000000e+00> : vector<8x128xf32>
    %19 = tpu.matmul %16, %18, %cst_15 {dimension_numbers = #tpu.dot_dimension_numbers<[1], [0], [0], [1], [0, 0, 1, 1], [], []>} : vector<8x128xf32>, vector<128x128xf32>, vector<8x128xf32> -> vector<8x128xf32>
    %c0_16 = arith.constant 0 : index
    %c0_17 = arith.constant 0 : index
    %20 = vector.load %arg4[%c0_16, %c0_17] : memref<8x128xf32, #tpu.memory_space<vmem>>, vector<8x128xf32>
    tpu.vector_store %arg4[%c0_16, %c0_17], %19 {strides = array<i32>} : memref<8x128xf32, #tpu.memory_space<vmem>>, vector<8x128xf32>,
    return
  }
  func.func @transform_0(%arg0: i32) -> (i32, i32) {
    %c0_i32 = arith.constant 0 : i32
    %c0_i32_0 = arith.constant 0 : i32
    return %arg0, %c0_i32 : i32, i32
  }
  func.func @transform_1(%arg0: i32) -> (i32, i32, i32) {
    %c0_i32 = arith.constant 0 : i32
    %c0_i32_0 = arith.constant 0 : i32
    %c0_i32_1 = arith.constant 0 : i32
    %c0_i32_2 = arith.constant 0 : i32
    return %c0_i32, %c0_i32_0, %c0_i32_1 : i32, i32, i32
  }
  func.func @transform_2(%arg0: i32) -> (i32, i32, i32) {
    %c0_i32 = arith.constant 0 : i32
    %c0_i32_0 = arith.constant 0 : i32
    %c0_i32_1 = arith.constant 0 : i32
    %c0_i32_2 = arith.constant 0 : i32
    return %c0_i32, %c0_i32_0, %c0_i32_1 : i32, i32, i32
  }
  func.func @transform_3(%arg0: i32) -> (i32, i32) {
    %c0_i32 = arith.constant 0 : i32
    %c0_i32_0 = arith.constant 0 : i32
    return %arg0, %c0_i32 : i32, i32
  }
}

</mosaic_0001>

<llo_original>
// kernel: mlp_fused.1
$region0: #{mlp_fused.1}
  #allocation0 [shape = 'u32[]', space=smem, size = 0x4, offset = 0x4, fixed_abs, tag = 'smem constant byte address 0x4 - core index']
  #allocation1 [shape = 'u32[144,128]{1,0:T(1,128)}', space=vmem, size = 0x12000, scoped, tag = 'internal scratch']
  %s0 = inlined_call_operand.vmem [shape: f32[8,128], index: 0, kind: input, shape index: {}]
  %s1 = inlined_call_operand.hbm [shape: f32[3,128,128], index: 1, kind: input, shape index: {}]
  %s2 = inlined_call_operand.vmem [shape: f32[2,1,128], index: 2, kind: input, shape index: {}]
  %s3 = inlined_call_operand.hbm [shape: f32[8,128], index: 3, kind: output, shape index: {}]
  %s4 = sld [smem:[#allocation0]]
  $region26: #{mlp_fused.1} parent=0
    _
  %s6 = ssub.s32 1, %s4
  %s7 = scalar_select 0, %s6, %s4
  $region1: #{mlp_fused.1} parent=0
    #allocation2 [shape = 'u8[196608]{0}', space=vmem, size = 0x30000, scoped, tag = 'input window, operand 1, single buffered']
    #allocation3 [shape = 's32[1]{0}', space=sflag, size = 0x4, scoped, tag = 'scoped memory for mlp_fused.1']
    #allocation4 [shape = 's32[1]{0}', space=sflag, size = 0x4, scoped, tag = 'scoped memory for mlp_fused.1']
    #allocation5 [shape = 'u8[4096]{0}', space=vmem, size = 0x1000, scoped, tag = 'output window, operand 0, single buffered']
    %8 = vsyncpa [#allocation3], 0
    %9 = vsyncpa [#allocation4], 0
    // Predicated region
    $region2: #{mlp_fused.1} parent=1 // pred_check
      _
    $region3: #{mlp_fused.1} parent=1 // pred_check_branch
      %11 = sbr.rel (0) target = $region5
    $region4: #{mlp_fused.1} parent=1 // pred_region
      _
    $region5: #{mlp_fused.1} parent=1 // pred_fallthru
      _
    // Predicated region
    $region6: #{mlp_fused.1} parent=1 // pred_check
      _
    $region7: #{mlp_fused.1} parent=1 // pred_check_branch
      %13 = sbr.rel (0) target = $region9
    $region8: #{mlp_fused.1} parent=1 // pred_region
      %s15 = ssub.s32 6144, 6144
      %16 = vsyncadd [#allocation3], %s15
      %s17 = sshll.u32 [#allocation2], 4
      %s18 = int_to_ptr.vmem [resolvable:$true] %s17
      %23 = dma.hbm_to_vmem [thread:$0]  %s1, 6144, %s18, [#allocation3], 128, 128, 8
    $region9: #{mlp_fused.1} parent=1 // pred_fallthru
      _
    // Predicated region
    $region10: #{mlp_fused.1} parent=1 // pred_check
      _
    $region11: #{mlp_fused.1} parent=1 // pred_check_branch
      %25 = sbr.rel (0) target = $region13
    $region12: #{mlp_fused.1} parent=1 // pred_region
      _
    $region13: #{mlp_fused.1} parent=1 // pred_fallthru
      _
    // Predicated region
    $region14: #{mlp_fused.1} parent=1 // pred_check
      _
    $region15: #{mlp_fused.1} parent=1 // pred_check_branch
      %27 = sbr.rel (0) target = $region17
    $region16: #{mlp_fused.1} parent=1 // pred_region
      %28 = dma.done [#allocation3], 6144
    $region17: #{mlp_fused.1} parent=1 // pred_fallthru
      _
    %v29 = vld [vmem:[%s0] sm:$0xff]
    %v30 = vld [vmem:[#allocation2] sm:$0xff]
    %v31 = vld [vmem:[#allocation2 + $0x8] sm:$0xff]
    %v32 = vld [vmem:[#allocation2 + $0x10] sm:$0xff]
    %v33 = vld [vmem:[#allocation2 + $0x18] sm:$0xff]
    %v34 = vld [vmem:[#allocation2 + $0x20] sm:$0xff]
    %v35 = vld [vmem:[#allocation2 + $0x28] sm:$0xff]
    %v36 = vld [vmem:[#allocation2 + $0x30] sm:$0xff]
    %v37 = vld [vmem:[#allocation2 + $0x38] sm:$0xff]
    %v38 = vld [vmem:[#allocation2 + $0x40] sm:$0xff]
    %v39 = vld [vmem:[#allocation2 + $0x48] sm:$0xff]
    %v40 = vld [vmem:[#allocation2 + $0x50] sm:$0xff]
    %v41 = vld [vmem:[#allocation2 + $0x58] sm:$0xff]
    %v42 = vld [vmem:[#allocation2 + $0x60] sm:$0xff]
    %v43 = vld [vmem:[#allocation2 + $0x68] sm:$0xff]
    %v44 = vld [vmem:[#allocation2 + $0x70] sm:$0xff]
    %v45 = vld [vmem:[#allocation2 + $0x78] sm:$0xff]
    %v46 = vld [vmem:[%s2] sm:$0x1]
    %v48 = vlaneseq
    %v49 = vshrl.u32 %v48, 7
    %v50 = vsub.s32 0, %v49
    %v51 = vrot.slane %v46, %v50
    %53 = vmatprep.subr.mxu0 0.0
    %54 = vmatpush1.msra.mxu0 %v30
    %55 = vmatprep.subr.mxu0 0.0
    %56 = vmatpush1.msra.mxu0 %v31
    %57 = vmatprep.subr.mxu0 0.0
    %58 = vmatpush1.msra.mxu0 %v32
    %59 = vmatprep.subr.mxu0 0.0
    %60 = vmatpush1.msra.mxu0 %v33
    %61 = vmatprep.subr.mxu0 0.0
    %62 = vmatpush1.msra.mxu0 %v34
    %63 = vmatprep.subr.mxu0 0.0
    %64 = vmatpush1.msra.mxu0 %v35
    %65 = vmatprep.subr.mxu0 0.0
    %66 = vmatpush1.msra.mxu0 %v36
    %67 = vmatprep.subr.mxu0 0.0
    %68 = vmatpush1.msra.mxu0 %v37
    %69 = vmatprep.subr.mxu0 0.0
    %70 = vmatpush1.msra.mxu0 %v38
    %71 = vmatprep.subr.mxu0 0.0
    %72 = vmatpush1.msra.mxu0 %v39
    %73 = vmatprep.subr.mxu0 0.0
    %74 = vmatpush1.msra.mxu0 %v40
    %75 = vmatprep.subr.mxu0 0.0
    %76 = vmatpush1.msra.mxu0 %v41
    %77 = vmatprep.subr.mxu0 0.0
    %78 = vmatpush1.msra.mxu0 %v42
    %79 = vmatprep.subr.mxu0 0.0
    %80 = vmatpush1.msra.mxu0 %v43
    %81 = vmatprep.subr.mxu0 0.0
    %82 = vmatpush1.msra.mxu0 %v44
    %83 = vmatprep.subr.mxu0 0.0
    %84 = vmatpush1.msra.mxu0 %v45
    %85 = vmatprep.subr.mxu0 0.0
    %86 = vmatpush1.msra.mxu0 0.0
    %87 = vmatprep.subr.mxu0 0.0
    %88 = vmatpush1.msra.mxu0 0.0
    %89 = vmatprep.subr.mxu0 0.0
    %90 = vmatpush1.msra.mxu0 0.0
    %91 = vmatprep.subr.mxu0 0.0
    %92 = vmatpush1.msra.mxu0 0.0
    %93 = vmatprep.subr.mxu0 0.0
    %94 = vmatpush1.msra.mxu0 0.0
    %95 = vmatprep.subr.mxu0 0.0
    %96 = vmatpush1.msra.mxu0 0.0
    %97 = vmatprep.subr.mxu0 0.0
    %98 = vmatpush1.msra.mxu0 0.0
    %99 = vmatprep.subr.mxu0 0.0
    %100 = vmatpush1.msra.mxu0 0.0
    %101 = vmatprep.subr.mxu0 0.0
    %102 = vmatpush1.msra.mxu0 0.0
    %103 = vmatprep.subr.mxu0 0.0
    %104 = vmatpush1.msra.mxu0 0.0
    %105 = vmatprep.subr.mxu0 0.0
    %106 = vmatpush1.msra.mxu0 0.0
    %107 = vmatprep.subr.mxu0 0.0
    %108 = vmatpush1.msra.mxu0 0.0
    %109 = vmatprep.subr.mxu0 0.0
    %110 = vmatpush1.msra.mxu0 0.0
    %111 = vmatprep.subr.mxu0 0.0
    %112 = vmatpush1.msra.mxu0 0.0
    %113 = vmatprep.subr.mxu0 0.0
    %114 = vmatpush1.msra.mxu0 0.0
    %115 = vmatprep.subr.mxu0 0.0
    %116 = vmatpush1.msra.mxu0 0.0
    %117 = vmatprep.mubr.f32.mxu0 0.0
    %118 = vmatmul.mubr.f32.gmra.mrb[0].mxu0 %v29
    %v119 = vpop.f32.mrb[0].mxu0
    %v120 = vadd.f32 %v51, %v119
    %v121 = vpop.f32.mrb[0].mxu0
    %122 = vdwg.mxu0
    %v123 = vtanh.pop %v120
    %s124 = scalar_lea.vmem [#allocation2], 128
    %v125 = vld [vmem:[%s124] sm:$0xff]
    %v126 = vld [vmem:[%s124 + $0x8] sm:$0xff]
    %v127 = vld [vmem:[%s124 + $0x10] sm:$0xff]
    %v128 = vld [vmem:[%s124 + $0x18] sm:$0xff]
    %v129 = vld [vmem:[%s124 + $0x20] sm:$0xff]
    %v130 = vld [vmem:[%s124 + $0x28] sm:$0xff]
    %v131 = vld [vmem:[%s124 + $0x30] sm:$0xff]
    %v132 = vld [vmem:[%s124 + $0x38] sm:$0xff]
    %v133 = vld [vmem:[%s124 + $0x40] sm:$0xff]
    %v134 = vld [vmem:[%s124 + $0x48] sm:$0xff]
    %v135 = vld [vmem:[%s124 + $0x50] sm:$0xff]
    %v136 = vld [vmem:[%s124 + $0x58] sm:$0xff]
    %v137 = vld [vmem:[%s124 + $0x60] sm:$0xff]
    %v138 = vld [vmem:[%s124 + $0x68] sm:$0xff]
    %v139 = vld [vmem:[%s124 + $0x70] sm:$0xff]
    %v140 = vld [vmem:[%s124 + $0x78] sm:$0xff]
    %s141 = scalar_lea.vmem %s2, 1
    %v142 = vld [vmem:[%s141] sm:$0x1]
    %v144 = vlaneseq
    %v145 = vshrl.u32 %v144, 7
    %v146 = vsub.s32 0, %v145
    %v147 = vrot.slane %v142, %v146
    %149 = vmatprep.subr.mxu0 0.0
    %150 = vmatpush1.msra.mxu0 %v125
    %151 = vmatprep.subr.mxu0 0.0
    %152 = vmatpush1.msra.mxu0 %v126
    %153 = vmatprep.subr.mxu0 0.0
    %154 = vmatpush1.msra.mxu0 %v127
    %155 = vmatprep.subr.mxu0 0.0
    %156 = vmatpush1.msra.mxu0 %v128
    %157 = vmatprep.subr.mxu0 0.0
    %158 = vmatpush1.msra.mxu0 %v129
    %159 = vmatprep.subr.mxu0 0.0
    %160 = vmatpush1.msra.mxu0 %v130
    %161 = vmatprep.subr.mxu0 0.0
    %162 = vmatpush1.msra.mxu0 %v131
    %163 = vmatprep.subr.mxu0 0.0
    %164 = vmatpush1.msra.mxu0 %v132
    %165 = vmatprep.subr.mxu0 0.0
    %166 = vmatpush1.msra.mxu0 %v133
    %167 = vmatprep.subr.mxu0 0.0
    %168 = vmatpush1.msra.mxu0 %v134
    %169 = vmatprep.subr.mxu0 0.0
    %170 = vmatpush1.msra.mxu0 %v135
    %171 = vmatprep.subr.mxu0 0.0
    %172 = vmatpush1.msra.mxu0 %v136
    %173 = vmatprep.subr.mxu0 0.0
    %174 = vmatpush1.msra.mxu0 %v137
    %175 = vmatprep.subr.mxu0 0.0
    %176 = vmatpush1.msra.mxu0 %v138
    %177 = vmatprep.subr.mxu0 0.0
    %178 = vmatpush1.msra.mxu0 %v139
    %179 = vmatprep.subr.mxu0 0.0
    %180 = vmatpush1.msra.mxu0 %v140
    %181 = vmatprep.subr.mxu0 0.0
    %182 = vmatpush1.msra.mxu0 0.0
    %183 = vmatprep.subr.mxu0 0.0
    %184 = vmatpush1.msra.mxu0 0.0
    %185 = vmatprep.subr.mxu0 0.0
    %186 = vmatpush1.msra.mxu0 0.0
    %187 = vmatprep.subr.mxu0 0.0
    %188 = vmatpush1.msra.mxu0 0.0
    %189 = vmatprep.subr.mxu0 0.0
    %190 = vmatpush1.msra.mxu0 0.0
    %191 = vmatprep.subr.mxu0 0.0
    %192 = vmatpush1.msra.mxu0 0.0
    %193 = vmatprep.subr.mxu0 0.0
    %194 = vmatpush1.msra.mxu0 0.0
    %195 = vmatprep.subr.mxu0 0.0
    %196 = vmatpush1.msra.mxu0 0.0
    %197 = vmatprep.subr.mxu0 0.0
    %198 = vmatpush1.msra.mxu0 0.0
    %199 = vmatprep.subr.mxu0 0.0
    %200 = vmatpush1.msra.mxu0 0.0
    %201 = vmatprep.subr.mxu0 0.0
    %202 = vmatpush1.msra.mxu0 0.0
    %203 = vmatprep.subr.mxu0 0.0
    %204 = vmatpush1.msra.mxu0 0.0
    %205 = vmatprep.subr.mxu0 0.0
    %206 = vmatpush1.msra.mxu0 0.0
    %207 = vmatprep.subr.mxu0 0.0
    %208 = vmatpush1.msra.mxu0 0.0
    %209 = vmatprep.subr.mxu0 0.0
    %210 = vmatpush1.msra.mxu0 0.0
    %211 = vmatprep.subr.mxu0 0.0
    %212 = vmatpush1.msra.mxu0 0.0
    %213 = vmatprep.mubr.f32.mxu0 0.0
    %214 = vmatmul.mubr.f32.gmra.mrb[0].mxu0 %v123
    %v215 = vpop.f32.mrb[0].mxu0
    %v216 = vadd.f32 %v147, %v215
    %v217 = vpop.f32.mrb[0].mxu0
    %218 = vdwg.mxu0
    %v219 = vtanh.pop %v216
    %s220 = scalar_lea.vmem [#allocation2], 256
    %v221 = vld [vmem:[%s220] sm:$0xff]
    %v222 = vld [vmem:[%s220 + $0x8] sm:$0xff]
    %v223 = vld [vmem:[%s220 + $0x10] sm:$0xff]
    %v224 = vld [vmem:[%s220 + $0x18] sm:$0xff]
    %v225 = vld [vmem:[%s220 + $0x20] sm:$0xff]
    %v226 = vld [vmem:[%s220 + $0x28] sm:$0xff]
    %v227 = vld [vmem:[%s220 + $0x30] sm:$0xff]
    %v228 = vld [vmem:[%s220 + $0x38] sm:$0xff]
    %v229 = vld [vmem:[%s220 + $0x40] sm:$0xff]
    %v230 = vld [vmem:[%s220 + $0x48] sm:$0xff]
    %v231 = vld [vmem:[%s220 + $0x50] sm:$0xff]
    %v232 = vld [vmem:[%s220 + $0x58] sm:$0xff]
    %v233 = vld [vmem:[%s220 + $0x60] sm:$0xff]
    %v234 = vld [vmem:[%s220 + $0x68] sm:$0xff]
    %v235 = vld [vmem:[%s220 + $0x70] sm:$0xff]
    %v236 = vld [vmem:[%s220 + $0x78] sm:$0xff]
    %237 = vmatprep.subr.mxu0 0.0
    %238 = vmatpush1.msra.mxu0 %v221
    %239 = vmatprep.subr.mxu0 0.0
    %240 = vmatpush1.msra.mxu0 %v222
    %241 = vmatprep.subr.mxu0 0.0
    %242 = vmatpush1.msra.mxu0 %v223
    %243 = vmatprep.subr.mxu0 0.0
    %244 = vmatpush1.msra.mxu0 %v224
    %245 = vmatprep.subr.mxu0 0.0
    %246 = vmatpush1.msra.mxu0 %v225
    %247 = vmatprep.subr.mxu0 0.0
    %248 = vmatpush1.msra.mxu0 %v226
    %249 = vmatprep.subr.mxu0 0.0
    %250 = vmatpush1.msra.mxu0 %v227
    %251 = vmatprep.subr.mxu0 0.0
    %252 = vmatpush1.msra.mxu0 %v228
    %253 = vmatprep.subr.mxu0 0.0
    %254 = vmatpush1.msra.mxu0 %v229
    %255 = vmatprep.subr.mxu0 0.0
    %256 = vmatpush1.msra.mxu0 %v230
    %257 = vmatprep.subr.mxu0 0.0
    %258 = vmatpush1.msra.mxu0 %v231
    %259 = vmatprep.subr.mxu0 0.0
    %260 = vmatpush1.msra.mxu0 %v232
    %261 = vmatprep.subr.mxu0 0.0
    %262 = vmatpush1.msra.mxu0 %v233
    %263 = vmatprep.subr.mxu0 0.0
    %264 = vmatpush1.msra.mxu0 %v234
    %265 = vmatprep.subr.mxu0 0.0
    %266 = vmatpush1.msra.mxu0 %v235
    %267 = vmatprep.subr.mxu0 0.0
    %268 = vmatpush1.msra.mxu0 %v236
    %269 = vmatprep.subr.mxu0 0.0
    %270 = vmatpush1.msra.mxu0 0.0
    %271 = vmatprep.subr.mxu0 0.0
    %272 = vmatpush1.msra.mxu0 0.0
    %273 = vmatprep.subr.mxu0 0.0
    %274 = vmatpush1.msra.mxu0 0.0
    %275 = vmatprep.subr.mxu0 0.0
    %276 = vmatpush1.msra.mxu0 0.0
    %277 = vmatprep.subr.mxu0 0.0
    %278 = vmatpush1.msra.mxu0 0.0
    %279 = vmatprep.subr.mxu0 0.0
    %280 = vmatpush1.msra.mxu0 0.0
    %281 = vmatprep.subr.mxu0 0.0
    %282 = vmatpush1.msra.mxu0 0.0
    %283 = vmatprep.subr.mxu0 0.0
    %284 = vmatpush1.msra.mxu0 0.0
    %285 = vmatprep.subr.mxu0 0.0
    %286 = vmatpush1.msra.mxu0 0.0
    %287 = vmatprep.subr.mxu0 0.0
    %288 = vmatpush1.msra.mxu0 0.0
    %289 = vmatprep.subr.mxu0 0.0
    %290 = vmatpush1.msra.mxu0 0.0
    %291 = vmatprep.subr.mxu0 0.0
    %292 = vmatpush1.msra.mxu0 0.0
    %293 = vmatprep.subr.mxu0 0.0
    %294 = vmatpush1.msra.mxu0 0.0
    %295 = vmatprep.subr.mxu0 0.0
    %296 = vmatpush1.msra.mxu0 0.0
    %297 = vmatprep.subr.mxu0 0.0
    %298 = vmatpush1.msra.mxu0 0.0
    %299 = vmatprep.subr.mxu0 0.0
    %300 = vmatpush1.msra.mxu0 0.0
    %301 = vmatprep.mubr.f32.mxu0 0.0
    %302 = vmatmul.mubr.f32.gmra.mrb[0].mxu0 %v219
    %v303 = vpop.f32.mrb[0].mxu0
    %v304 = vadd.f32 0.0, %v303
    %v305 = vpop.f32.mrb[0].mxu0
    %306 = vdwg.mxu0
    %307 = vst [vmem:[#allocation5] sm:$0xff] %v304
    // Predicated region
    $region18: #{mlp_fused.1} parent=1 // pred_check
      _
    $region19: #{mlp_fused.1} parent=1 // pred_check_branch
      %309 = sbr.rel (0) target = $region21
    $region20: #{mlp_fused.1} parent=1 // pred_region
      %s311 = ssub.s32 128, 128
      %312 = vsyncadd [#allocation4], %s311
      %s314 = sshll.u32 [#allocation5], 4
      %s315 = int_to_ptr.vmem [resolvable:$true] %s314
      %317 = dma.vmem_to_hbm [thread:$0]  %s315, 128, %s3, [#allocation4]
    $region21: #{mlp_fused.1} parent=1 // pred_fallthru
      _
    // Predicated region
    $region22: #{mlp_fused.1} parent=1 // pred_check
      _
    $region23: #{mlp_fused.1} parent=1 // pred_check_branch
      %319 = sbr.rel (0) target = $region25
    $region24: #{mlp_fused.1} parent=1 // pred_region
      %320 = dma.done [#allocation4], 128
    $region25: #{mlp_fused.1} parent=1 // pred_fallthru
      _
    %321 = vsyncpa [#allocation3], 1
    %322 = vsyncpa [#allocation4], 1

</llo_original>
